<compile_context>
chip_gen: v6e
topology: v6e:2x2x1
jax: 0.10.0
libtpu: 0.0.40
codegen_flags: <defaults>
</compile_context>

<pallas_src>
from functools import partial

import jax
import jax.numpy as jnp
from jax.experimental import pallas as pl
from jax.experimental.pallas import tpu as pltpu


def _cross_attention_kernel(q_ref, k_ref, v_ref,
                            wq_ref, wk_ref, wv_ref, wfc_ref,
                            gamma_ref, beta_ref,
                            out_ref,
                            acc_ref,
                            *, block_b, len_q, len_k, d_k, d_v, eps, compute_dtype):
    h = pl.program_id(1)
    n_head = pl.num_programs(1)

    cast = lambda a: a.astype(compute_dtype)   # no-op for pre-cast operands

    @pl.when(h == 0)
    def _init():
        acc_ref[...] = jnp.zeros_like(acc_ref)

    # Per-head weight slabs, selected by the BlockSpec index_map (DMA does the split).
    wq = wq_ref[0]    # (d_model, d_k)
    wk = wk_ref[0]    # (d_model, d_k)
    wv = wv_ref[0]    # (d_model, d_v)
    wfc = wfc_ref[0]  # (d_v, d_output)

    xq = q_ref[...]   # (block_b*len_q, d_model)  -- compute_dtype
    xk = k_ref[...]   # (block_b*len_k, d_model)
    xv = v_ref[...]   # (block_b*len_k, d_model)

    # Head-h projections: bf16 MXU operands, fp32 accumulation.
    Qh = jnp.dot(xq, wq, preferred_element_type=jnp.float32)
    Kh = jnp.dot(xk, wk, preferred_element_type=jnp.float32)
    Vh = jnp.dot(xv, wv, preferred_element_type=jnp.float32)

    inv_temp = 1.0 / (d_k ** 0.5)
    Q3 = (Qh * inv_temp).reshape(block_b, len_q, d_k)   # scale applied once per head
    K3 = Kh.reshape(block_b, len_k, d_k)
    V3 = Vh.reshape(block_b, len_k, d_v)

    # scores = (q/temp) . k^T : contraction over d_k, batched over the block's batch
    # dimension -- no materialized transpose.
    scores = jnp.einsum('bqd,bkd->bqk', cast(Q3), cast(K3),
                        preferred_element_type=jnp.float32)   # (block_b, len_q, len_k)

    # Softmax (fp32); approx reciprocal runs on the EUP slot.
    scores = scores - jnp.max(scores, axis=-1, keepdims=True)
    p = jnp.exp(scores)
    attn = p * pl.reciprocal(jnp.sum(p, axis=-1, keepdims=True), approx=True)

    o_h = jnp.einsum('bqk,bkd->bqd', cast(attn), cast(V3),
                     preferred_element_type=jnp.float32)      # (block_b, len_q, d_v)

    # concat_h(o_h) @ Wfc == sum_h (o_h @ Wfc[h]) -> accumulate the fc output per head.
    o2 = o_h.reshape(block_b * len_q, d_v)
    acc_ref[...] += jnp.dot(cast(o2), wfc, preferred_element_type=jnp.float32)

    @pl.when(h == n_head - 1)
    def _finalize():
        x = acc_ref[...]                                      # (block_b*len_q, d_output)
        # `residual = q; q += residual` doubles the fc output before LayerNorm.
        # LayerNorm(2x, eps) == LayerNorm(x, eps/4): fold the doubling into eps.
        mean = jnp.mean(x, axis=-1, keepdims=True)
        var = jnp.mean((x - mean) ** 2, axis=-1, keepdims=True)
        xn = (x - mean) * jax.lax.rsqrt(var + eps * 0.25)
        y = xn * gamma_ref[...] + beta_ref[...]
        out_ref[...] = y.astype(out_ref.dtype)


def _pick_block_b(B, Lq, Lk, d_model, d_output, elem_bytes, out_bytes,
                  budget_bytes=8 << 20):
    """Largest divisor of B whose working set fits the budget and whose row-slab
    heights respect the (8, 128) sublane rule (or span the full array)."""
    best = None
    for cand in range(1, B + 1):
        if B % cand:
            continue
        rows_ok = (cand == B) or ((cand * Lq) % 8 == 0 and (cand * Lk) % 8 == 0)
        if not rows_ok:
            continue
        est = (2 * cand * (Lq + 2 * Lk) * d_model * elem_bytes   # dbl-buffered q/k/v
               + 2 * cand * Lq * d_output * out_bytes            # dbl-buffered out
               + cand * Lq * d_output * 4                        # f32 accumulator
               + 4 * cand * Lq * Lk * 4)                         # scores/probs temps
        if est <= budget_bytes:
            best = cand
    if best is None:
        best = 1 if (Lq % 8 == 0 and Lk % 8 == 0) else B
    return best


def cross_attention(q, k, v, wq, wk, wv, wfc, gamma, beta,
                    *, n_head, d_k, d_v, block_b=None,
                    compute_dtype=jnp.bfloat16, eps=1e-6):
    """q,k,v: (B, L, d_model). Weights stored as (in_features, out_features) == W^T of
    nn.Linear. gamma/beta: (d_output,). Returns (B, Lq, d_output)."""
    B, Lq, d_model = q.shape
    Lk = k.shape[1]
    Lv = v.shape[1]
    assert Lk == Lv, "attention requires len_k == len_v"
    d_output = wfc.shape[1]
    assert wq.shape == (d_model, n_head * d_k)
    assert wk.shape == (d_model, n_head * d_k)
    assert wv.shape == (d_model, n_head * d_v)
    assert wfc.shape == (n_head * d_v, d_output)

    out_dtype = q.dtype
    elem_bytes = jnp.dtype(compute_dtype).itemsize
    out_bytes = jnp.dtype(out_dtype).itemsize

    if block_b is None:
        block_b = _pick_block_b(B, Lq, Lk, d_model, d_output, elem_bytes, out_bytes)
    assert B % block_b == 0

    # One-time layout plumbing on the host side: per-head weight slabs so the Pallas
    # DMA (not in-kernel lane slicing) separates heads; flatten (batch, seq) rows.
    # Everything the MXU consumes is pre-cast once to compute_dtype (halves DMA bytes,
    # removes per-head in-kernel casts).
    wq3 = wq.reshape(d_model, n_head, d_k).transpose(1, 0, 2).astype(compute_dtype)
    wk3 = wk.reshape(d_model, n_head, d_k).transpose(1, 0, 2).astype(compute_dtype)
    wv3 = wv.reshape(d_model, n_head, d_v).transpose(1, 0, 2).astype(compute_dtype)
    wfc3 = wfc.reshape(n_head, d_v, d_output).astype(compute_dtype)
    gamma2 = gamma.reshape(1, d_output).astype(jnp.float32)
    beta2 = beta.reshape(1, d_output).astype(jnp.float32)

    q2 = q.reshape(B * Lq, d_model).astype(compute_dtype)
    k2 = k.reshape(B * Lk, d_model).astype(compute_dtype)
    v2 = v.reshape(B * Lv, d_model).astype(compute_dtype)

    kernel = partial(_cross_attention_kernel,
                     block_b=block_b, len_q=Lq, len_k=Lk,
                     d_k=d_k, d_v=d_v, eps=eps, compute_dtype=compute_dtype)

    out2 = pl.pallas_call(
        kernel,
        out_shape=jax.ShapeDtypeStruct((B * Lq, d_output), out_dtype),
        grid_spec=pltpu.PrefetchScalarGridSpec(
            num_scalar_prefetch=0,
            grid=(B // block_b, n_head),          # heads = reduction (inner) axis
            in_specs=[
                pl.BlockSpec((block_b * Lq, d_model), lambda b, h: (b, 0)),
                pl.BlockSpec((block_b * Lk, d_model), lambda b, h: (b, 0)),
                pl.BlockSpec((block_b * Lv, d_model), lambda b, h: (b, 0)),
                pl.BlockSpec((1, d_model, d_k), lambda b, h: (h, 0, 0)),
                pl.BlockSpec((1, d_model, d_k), lambda b, h: (h, 0, 0)),
                pl.BlockSpec((1, d_model, d_v), lambda b, h: (h, 0, 0)),
                pl.BlockSpec((1, d_v, d_output), lambda b, h: (h, 0, 0)),
                pl.BlockSpec((1, d_output), lambda b, h: (0, 0)),
                pl.BlockSpec((1, d_output), lambda b, h: (0, 0)),
            ],
            out_specs=pl.BlockSpec((block_b * Lq, d_output), lambda b, h: (b, 0)),
            scratch_shapes=[pltpu.VMEM((block_b * Lq, d_output), jnp.float32)],
        ),
        compiler_params=pltpu.CompilerParams(
            dimension_semantics=("parallel", "arbitrary")),
    )(q2, k2, v2, wq3, wk3, wv3, wfc3, gamma2, beta2)

    return out2.reshape(B, Lq, d_output)


def reference(q, k, v, wq, wk, wv, wfc, gamma, beta, *, n_head, d_k, d_v):
    """Pure-JAX fp32 mirror of the PyTorch forward (dropout = identity)."""
    B, Lq, _ = q.shape
    Q = (q @ wq).reshape(B, Lq, n_head, d_k).transpose(0, 2, 1, 3)
    K = (k @ wk).reshape(B, -1, n_head, d_k).transpose(0, 2, 1, 3)
    V = (v @ wv).reshape(B, -1, n_head, d_v).transpose(0, 2, 1, 3)
    attn = (Q / (d_k ** 0.5)) @ jnp.swapaxes(K, -1, -2)
    attn = jax.nn.softmax(attn, axis=-1)
    o = attn @ V
    o = o.transpose(0, 2, 1, 3).reshape(B, Lq, n_head * d_v)
    o = o @ wfc
    x = o + o                       # residual = q; q += residual
    mean = x.mean(-1, keepdims=True)
    var = ((x - mean) ** 2).mean(-1, keepdims=True)
    return ((x - mean) / jnp.sqrt(var + 1e-6)
            * gamma.reshape(1, 1, -1) + beta.reshape(1, 1, -1))


if __name__ == "__main__":
    # Small, module-consistent shapes.
    B, Lq, Lk = 2, 8, 8
    d_model, n_head, d_k, d_v, d_output = 32, 2, 16, 16, 32

    key = jax.random.PRNGKey(0)
    kq, kk, kv, kwq, kwk, kwv, kwf = jax.random.split(key, 7)

    q = jax.random.normal(kq, (B, Lq, d_model), dtype=jnp.float32)
    k = jax.random.normal(kk, (B, Lk, d_model), dtype=jnp.float32)
    v = jax.random.normal(kv, (B, Lk, d_model), dtype=jnp.float32)

    # Weights stored as (in_features, out_features) == W^T of nn.Linear.
    wq = 0.1 * jax.random.normal(kwq, (d_model, n_head * d_k), dtype=jnp.float32)
    wk = 0.1 * jax.random.normal(kwk, (d_model, n_head * d_k), dtype=jnp.float32)
    wv = 0.1 * jax.random.normal(kwv, (d_model, n_head * d_v), dtype=jnp.float32)
    wfc = 0.1 * jax.random.normal(kwf, (n_head * d_v, d_output), dtype=jnp.float32)

    # LayerNorm params at PyTorch defaults.
    gamma = jnp.ones((d_output,), dtype=jnp.float32)
    beta = jnp.zeros((d_output,), dtype=jnp.float32)

    out = cross_attention(q, k, v, wq, wk, wv, wfc, gamma, beta,
                          n_head=n_head, d_k=d_k, d_v=d_v)
    out = jax.block_until_ready(out)

    ref = reference(q, k, v, wq, wk, wv, wfc, gamma, beta,
                    n_head=n_head, d_k=d_k, d_v=d_v)
    assert out.shape == (B, Lq, d_output)
    # bf16 MXU operands + approx reciprocal -> slightly widened tolerance vs fp32 ref.
    assert jnp.allclose(out, ref, atol=5e-2, rtol=5e-2), "mismatch vs JAX reference"

    print("KERNEL_OK")
</pallas_src>

<mosaic_0001>
module attributes {stable_mosaic.version = 11 : i64} {
  func.func @_cross_attention_kernel(%arg0: i32, %arg1: i32, %arg2: memref<16x32xbf16, #tpu.memory_space<vmem>>, %arg3: memref<16x32xbf16, #tpu.memory_space<vmem>>, %arg4: memref<16x32xbf16, #tpu.memory_space<vmem>>, %arg5: memref<1x32x16xbf16, #tpu.memory_space<vmem>>, %arg6: memref<1x32x16xbf16, #tpu.memory_space<vmem>>, %arg7: memref<1x32x16xbf16, #tpu.memory_space<vmem>>, %arg8: memref<1x16x32xbf16, #tpu.memory_space<vmem>>, %arg9: memref<1x32xf32, #tpu.memory_space<vmem>>, %arg10: memref<1x32xf32, #tpu.memory_space<vmem>>, %arg11: memref<16x32xf32, #tpu.memory_space<vmem>>, %arg12: memref<16x32xf32, #tpu.memory_space<vmem>>) attributes {dimension_semantics = [#tpu.dimension_semantics<parallel>, #tpu.dimension_semantics<arbitrary>], iteration_bounds = array<i64: 1, 2>, scalar_prefetch = 0 : i64, scratch_operands = 1 : i64, tpu.core_type = #tpu.core_type<tc>, window_params = [{transform_indices = @transform_0, window_bounds = array<i64: 16, 32>}, {transform_indices = @transform_1, window_bounds = array<i64: 16, 32>}, {transform_indices = @transform_2, window_bounds = array<i64: 16, 32>}, {transform_indices = @transform_3, window_bounds = array<i64: 1, 32, 16>}, {transform_indices = @transform_4, window_bounds = array<i64: 1, 32, 16>}, {transform_indices = @transform_5, window_bounds = array<i64: 1, 32, 16>}, {transform_indices = @transform_6, window_bounds = array<i64: 1, 16, 32>}, {pipeline_mode = #tpu.pipeline_mode<synchronous>, transform_indices = @transform_7, window_bounds = array<i64: 1, 32>}, {pipeline_mode = #tpu.pipeline_mode<synchronous>, transform_indices = @transform_8, window_bounds = array<i64: 1, 32>}, {transform_indices = @transform_9, window_bounds = array<i64: 16, 32>}]} {
    %c0_i32 = arith.constant 0 : i32
    %0 = arith.cmpi eq, %arg1, %c0_i32 : i32
    %1 = arith.extui %0 : i1 to i32
    %c0_i32_0 = arith.constant 0 : i32
    %2 = arith.cmpi ne, %1, %c0_i32_0 : i32
    scf.if %2 {
      %cst_31 = arith.constant 0.000000e+00 : f32
      %47 = vector.broadcast %cst_31 : f32 to vector<16x32xf32>
      %c0_32 = arith.constant 0 : index
      %c0_33 = arith.constant 0 : index
      %48 = vector.load %arg12[%c0_32, %c0_33] : memref<16x32xf32, #tpu.memory_space<vmem>>, vector<16x32xf32>
      tpu.vector_store %arg12[%c0_32, %c0_33], %47 {strides = array<i32>} : memref<16x32xf32, #tpu.memory_space<vmem>>, vector<16x32xf32>,
    } else {
    }
    %c0 = arith.constant 0 : index
    %c0_1 = arith.constant 0 : index
    %c0_2 = arith.constant 0 : index
    %3 = vector.load %arg5[%c0, %c0_1, %c0_2] : memref<1x32x16xbf16, #tpu.memory_space<vmem>>, vector<1x32x16xbf16>
    %4 = vector.shape_cast %3 : vector<1x32x16xbf16> to vector<32x16xbf16>
    %c0_3 = arith.constant 0 : index
    %c0_4 = arith.constant 0 : index
    %c0_5 = arith.constant 0 : index
    %5 = vector.load %arg6[%c0_3, %c0_4, %c0_5] : memref<1x32x16xbf16, #tpu.memory_space<vmem>>, vector<1x32x16xbf16>
    %6 = vector.shape_cast %5 : vector<1x32x16xbf16> to vector<32x16xbf16>
    %c0_6 = arith.constant 0 : index
    %c0_7 = arith.constant 0 : index
    %c0_8 = arith.constant 0 : index
    %7 = vector.load %arg7[%c0_6, %c0_7, %c0_8] : memref<1x32x16xbf16, #tpu.memory_space<vmem>>, vector<1x32x16xbf16>
    %8 = vector.shape_cast %7 : vector<1x32x16xbf16> to vector<32x16xbf16>
    %c0_9 = arith.constant 0 : index
    %c0_10 = arith.constant 0 : index
    %c0_11 = arith.constant 0 : index
    %9 = vector.load %arg8[%c0_9, %c0_10, %c0_11] : memref<1x16x32xbf16, #tpu.memory_space<vmem>>, vector<1x16x32xbf16>
    %10 = vector.shape_cast %9 : vector<1x16x32xbf16> to vector<16x32xbf16>
    %c0_12 = arith.constant 0 : index
    %c0_13 = arith.constant 0 : index
    %11 = vector.load %arg2[%c0_12, %c0_13] : memref<16x32xbf16, #tpu.memory_space<vmem>>, vector<16x32xbf16>
    %c0_14 = arith.constant 0 : index
    %c0_15 = arith.constant 0 : index
    %12 = vector.load %arg3[%c0_14, %c0_15] : memref<16x32xbf16, #tpu.memory_space<vmem>>, vector<16x32xbf16>
    %c0_16 = arith.constant 0 : index
    %c0_17 = arith.constant 0 : index
    %13 = vector.load %arg4[%c0_16, %c0_17] : memref<16x32xbf16, #tpu.memory_space<vmem>>, vector<16x32xbf16>
    %cst = arith.constant dense<0.000000e+00> : vector<16x16xf32>
    %14 = tpu.matmul %11, %4, %cst {dimension_numbers = #tpu.dot_dimension_numbers<[1], [0], [0], [1], [0, 0, 1, 1], [], []>} : vector<16x32xbf16>, vector<32x16xbf16>, vector<16x16xf32> -> vector<16x16xf32>
    %cst_18 = arith.constant dense<0.000000e+00> : vector<16x16xf32>
    %15 = tpu.matmul %12, %6, %cst_18 {dimension_numbers = #tpu.dot_dimension_numbers<[1], [0], [0], [1], [0, 0, 1, 1], [], []>} : vector<16x32xbf16>, vector<32x16xbf16>, vector<16x16xf32> -> vector<16x16xf32>
    %cst_19 = arith.constant dense<0.000000e+00> : vector<16x16xf32>
    %16 = tpu.matmul %13, %8, %cst_19 {dimension_numbers = #tpu.dot_dimension_numbers<[1], [0], [0], [1], [0, 0, 1, 1], [], []>} : vector<16x32xbf16>, vector<32x16xbf16>, vector<16x16xf32> -> vector<16x16xf32>
    %cst_20 = arith.constant 2.500000e-01 : f32
    %17 = vector.broadcast %cst_20 : f32 to vector<16x16xf32>
    %18 = arith.mulf %14, %17 : vector<16x16xf32>
    %19 = vector.shape_cast %18 : vector<16x16xf32> to vector<2x8x16xf32>
    %20 = vector.shape_cast %15 : vector<16x16xf32> to vector<2x8x16xf32>
    %21 = vector.shape_cast %16 : vector<16x16xf32> to vector<2x8x16xf32>
    %22 = arith.truncf %19 : vector<2x8x16xf32> to vector<2x8x16xbf16>
    %23 = arith.truncf %20 : vector<2x8x16xf32> to vector<2x8x16xbf16>
    "tpu.trace_start"() <{level = 10 : i32, message = "bqd,bkd->bqk"}> : () -> ()
    %cst_21 = arith.constant dense<0.000000e+00> : vector<2x8x8xf32>
    %24 = tpu.matmul %22, %23, %cst_21 {dimension_numbers = #tpu.dot_dimension_numbers<[2], [2], [1], [1], [0, 0, 0, 1, 1, 1], [0], [0]>} : vector<2x8x16xbf16>, vector<2x8x16xbf16>, vector<2x8x8xf32> -> vector<2x8x8xf32>
    "tpu.trace_stop"() : () -> ()
    %cst_22 = arith.constant dense<0xFF800000> : vector<2x8xf32>
    %25 = vector.multi_reduction <maximumf>, %24, %cst_22 [2] : vector<2x8x8xf32> to vector<2x8xf32>
    %26 = vector.shape_cast %25 : vector<2x8xf32> to vector<2x8x1xf32>
    %27 = vector.broadcast %26 : vector<2x8x1xf32> to vector<2x8x8xf32>
    %28 = arith.subf %24, %27 : vector<2x8x8xf32>
    %29 = math.exp %28 : vector<2x8x8xf32>
    %cst_23 = arith.constant dense<0.000000e+00> : vector<2x8xf32>
    %30 = vector.multi_reduction <add>, %29, %cst_23 [2] : vector<2x8x8xf32> to vector<2x8xf32>
    %31 = vector.shape_cast %30 : vector<2x8xf32> to vector<2x8x1xf32>
    %32 = tpu.reciprocal %31 {approx = true} : vector<2x8x1xf32> -> vector<2x8x1xf32>
    %33 = vector.broadcast %32 : vector<2x8x1xf32> to vector<2x8x8xf32>
    %34 = arith.mulf %29, %33 : vector<2x8x8xf32>
    %35 = arith.truncf %34 : vector<2x8x8xf32> to vector<2x8x8xbf16>
    %36 = arith.truncf %21 : vector<2x8x16xf32> to vector<2x8x16xbf16>
    "tpu.trace_start"() <{level = 10 : i32, message = "bqk,bkd->bqd"}> : () -> ()
    %cst_24 = arith.constant dense<0.000000e+00> : vector<2x8x16xf32>
    %37 = tpu.matmul %35, %36, %cst_24 {dimension_numbers = #tpu.dot_dimension_numbers<[2], [1], [1], [2], [0, 0, 0, 1, 1, 2], [0], [0]>} : vector<2x8x8xbf16>, vector<2x8x16xbf16>, vector<2x8x16xf32> -> vector<2x8x16xf32>
    "tpu.trace_stop"() : () -> ()
    %38 = vector.shape_cast %37 : vector<2x8x16xf32> to vector<16x16xf32>
    %c0_25 = arith.constant 0 : index
    %c0_26 = arith.constant 0 : index
    %39 = vector.load %arg12[%c0_25, %c0_26] : memref<16x32xf32, #tpu.memory_space<vmem>>, vector<16x32xf32>
    %40 = arith.truncf %38 : vector<16x16xf32> to vector<16x16xbf16>
    %cst_27 = arith.constant dense<0.000000e+00> : vector<16x32xf32>
    %41 = tpu.matmul %40, %10, %cst_27 {dimension_numbers = #tpu.dot_dimension_numbers<[1], [0], [0], [1], [0, 0, 1, 1], [], []>} : vector<16x16xbf16>, vector<16x32xbf16>, vector<16x32xf32> -> vector<16x32xf32>
    %42 = arith.addf %39, %41 : vector<16x32xf32>
    %c0_28 = arith.constant 0 : index
    %c0_29 = arith.constant 0 : index
    %43 = vector.load %arg12[%c0_28, %c0_29] : memref<16x32xf32, #tpu.memory_space<vmem>>, vector<16x32xf32>
    tpu.vector_store %arg12[%c0_28, %c0_29], %42 {strides = array<i32>} : memref<16x32xf32, #tpu.memory_space<vmem>>, vector<16x32xf32>,
    %c1_i32 = arith.constant 1 : i32
    %44 = arith.cmpi eq, %arg1, %c1_i32 : i32
    %45 = arith.extui %44 : i1 to i32
    %c0_i32_30 = arith.constant 0 : i32
    %46 = arith.cmpi ne, %45, %c0_i32_30 : i32
    scf.if %46 {
      %c0_31 = arith.constant 0 : index
      %c0_32 = arith.constant 0 : index
      %47 = vector.load %arg12[%c0_31, %c0_32] : memref<16x32xf32, #tpu.memory_space<vmem>>, vector<16x32xf32>
      %cst_33 = arith.constant dense<0.000000e+00> : vector<16xf32>
      %48 = vector.multi_reduction <add>, %47, %cst_33 [1] : vector<16x32xf32> to vector<16xf32>
      %49 = vector.shape_cast %48 : vector<16xf32> to vector<16x1xf32>
      %cst_34 = arith.constant 3.200000e+01 : f32
      %50 = vector.broadcast %cst_34 : f32 to vector<16x1xf32>
      %51 = arith.divf %49, %50 : vector<16x1xf32>
      %52 = vector.broadcast %51 : vector<16x1xf32> to vector<16x32xf32>
      %53 = arith.subf %47, %52 : vector<16x32xf32>
      %54 = arith.mulf %53, %53 : vector<16x32xf32>
      %cst_35 = arith.constant dense<0.000000e+00> : vector<16xf32>
      %55 = vector.multi_reduction <add>, %54, %cst_35 [1] : vector<16x32xf32> to vector<16xf32>
      %56 = vector.shape_cast %55 : vector<16xf32> to vector<16x1xf32>
      %cst_36 = arith.constant 3.200000e+01 : f32
      %57 = vector.broadcast %cst_36 : f32 to vector<16x1xf32>
      %58 = arith.divf %56, %57 : vector<16x1xf32>
      %59 = vector.broadcast %51 : vector<16x1xf32> to vector<16x32xf32>
      %60 = arith.subf %47, %59 : vector<16x32xf32>
      %cst_37 = arith.constant 2.500000e-07 : f32
      %61 = vector.broadcast %cst_37 : f32 to vector<16x1xf32>
      %62 = arith.addf %58, %61 : vector<16x1xf32>
      %63 = math.rsqrt %62 : vector<16x1xf32>
      %64 = vector.broadcast %63 : vector<16x1xf32> to vector<16x32xf32>
      %65 = arith.mulf %60, %64 : vector<16x32xf32>
      %c0_38 = arith.constant 0 : index
      %c0_39 = arith.constant 0 : index
      %66 = vector.load %arg9[%c0_38, %c0_39] : memref<1x32xf32, #tpu.memory_space<vmem>>, vector<1x32xf32>
      %67 = vector.broadcast %66 : vector<1x32xf32> to vector<16x32xf32>
      %68 = arith.mulf %65, %67 : vector<16x32xf32>
      %c0_40 = arith.constant 0 : index
      %c0_41 = arith.constant 0 : index
      %69 = vector.load %arg10[%c0_40, %c0_41] : memref<1x32xf32, #tpu.memory_space<vmem>>, vector<1x32xf32>
      %70 = vector.broadcast %69 : vector<1x32xf32> to vector<16x32xf32>
      %71 = arith.addf %68, %70 : vector<16x32xf32>
      %c0_42 = arith.constant 0 : index
      %c0_43 = arith.constant 0 : index
      %72 = vector.load %arg11[%c0_42, %c0_43] : memref<16x32xf32, #tpu.memory_space<vmem>>, vector<16x32xf32>
      tpu.vector_store %arg11[%c0_42, %c0_43], %71 {strides = array<i32>} : memref<16x32xf32, #tpu.memory_space<vmem>>, vector<16x32xf32>,
    } else {
    }
    return
  }
  func.func @transform_0(%arg0: i32, %arg1: i32) -> (i32, i32) {
    %c0_i32 = arith.constant 0 : i32
    %c0_i32_0 = arith.constant 0 : i32
    return %arg0, %c0_i32 : i32, i32
  }
  func.func @transform_1(%arg0: i32, %arg1: i32) -> (i32, i32) {
    %c0_i32 = arith.constant 0 : i32
    %c0_i32_0 = arith.constant 0 : i32
    return %arg0, %c0_i32 : i32, i32
  }
  func.func @transform_2(%arg0: i32, %arg1: i32) -> (i32, i32) {
    %c0_i32 = arith.constant 0 : i32
    %c0_i32_0 = arith.constant 0 : i32
    return %arg0, %c0_i32 : i32, i32
  }
  func.func @transform_3(%arg0: i32, %arg1: i32) -> (i32, i32, i32) {
    %c0_i32 = arith.constant 0 : i32
    %c0_i32_0 = arith.constant 0 : i32
    %c0_i32_1 = arith.constant 0 : i32
    return %arg1, %c0_i32, %c0_i32_0 : i32, i32, i32
  }
  func.func @transform_4(%arg0: i32, %arg1: i32) -> (i32, i32, i32) {
    %c0_i32 = arith.constant 0 : i32
    %c0_i32_0 = arith.constant 0 : i32
    %c0_i32_1 = arith.constant 0 : i32
    return %arg1, %c0_i32, %c0_i32_0 : i32, i32, i32
  }
  func.func @transform_5(%arg0: i32, %arg1: i32) -> (i32, i32, i32) {
    %c0_i32 = arith.constant 0 : i32
    %c0_i32_0 = arith.constant 0 : i32
    %c0_i32_1 = arith.constant 0 : i32
    return %arg1, %c0_i32, %c0_i32_0 : i32, i32, i32
  }
  func.func @transform_6(%arg0: i32, %arg1: i32) -> (i32, i32, i32) {
    %c0_i32 = arith.constant 0 : i32
    %c0_i32_0 = arith.constant 0 : i32
    %c0_i32_1 = arith.constant 0 : i32
    return %arg1, %c0_i32, %c0_i32_0 : i32, i32, i32
  }
  func.func @transform_7(%arg0: i32, %arg1: i32) -> (i32, i32) {
    %c0_i32 = arith.constant 0 : i32
    %c0_i32_0 = arith.constant 0 : i32
    %c0_i32_1 = arith.constant 0 : i32
    return %c0_i32, %c0_i32_0 : i32, i32
  }
  func.func @transform_8(%arg0: i32, %arg1: i32) -> (i32, i32) {
    %c0_i32 = arith.constant 0 : i32
    %c0_i32_0 = arith.constant 0 : i32
    %c0_i32_1 = arith.constant 0 : i32
    return %c0_i32, %c0_i32_0 : i32, i32
  }
  func.func @transform_9(%arg0: i32, %arg1: i32) -> (i32, i32) {
    %c0_i32 = arith.constant 0 : i32
    %c0_i32_0 = arith.constant 0 : i32
    return %arg0, %c0_i32 : i32, i32
  }
}

</mosaic_0001>

<llo_original>
// kernel: tpu_custom_call.1
$region0: #{tpu_custom_call.1}
  #allocation0 [shape = 'u32[]', space=smem, size = 0x4, offset = 0x4, fixed_abs, tag = 'smem constant byte address 0x4 - core index']
  #allocation1 [shape = 'u32[144,128]{1,0:T(1,128)}', space=vmem, size = 0x12000, scoped, tag = 'internal scratch']
  #allocation2 [shape = 'f32[16,32]{1,0:T(8,128)}', space=vmem, size = 0x2000, scoped, tag = 'scratch operand']
  %s0 = inlined_call_operand.vmem [shape: bf16[16,32], index: 0, kind: input, shape index: {}]
  %s1 = inlined_call_operand.vmem [shape: bf16[16,32], index: 1, kind: input, shape index: {}]
  %s2 = inlined_call_operand.vmem [shape: bf16[16,32], index: 2, kind: input, shape index: {}]
  %s3 = inlined_call_operand.vmem [shape: bf16[2,32,16], index: 3, kind: input, shape index: {}]
  %s4 = inlined_call_operand.vmem [shape: bf16[2,32,16], index: 4, kind: input, shape index: {}]
  %s5 = inlined_call_operand.vmem [shape: bf16[2,32,16], index: 5, kind: input, shape index: {}]
  %s6 = inlined_call_operand.vmem [shape: bf16[2,16,32], index: 6, kind: input, shape index: {}]
  %s7 = inlined_call_operand.vmem [shape: f32[1,32], index: 7, kind: input, shape index: {}]
  %s8 = inlined_call_operand.vmem [shape: f32[1,32], index: 8, kind: input, shape index: {}]
  %s9 = inlined_call_operand.hbm [shape: f32[16,32], index: 9, kind: output, shape index: {}]
  %s10 = sld [smem:[#allocation0]]
  $region77: #{tpu_custom_call.1} parent=0
    _
  %s12 = ssub.s32 1, %s10
  %s13 = scalar_select 0, %s12, %s10
  $region1: #{tpu_custom_call.1} parent=0
    #allocation3 [shape = 'u8[8192]{0}', space=vmem, size = 0x2000, scoped, tag = 'output window, operand 0, single buffered']
    #allocation4 [shape = 's32[2]{0}', space=sflag, size = 0x8, scoped, tag = 'scoped memory for tpu_custom_call.1']
    %14 = vsyncpa [#allocation4], 0
    loop: start=0, step=1, limit=4
    $region2: #{tpu_custom_call.1} parent=1 // loop_pre_header
      _
    $region3: #{tpu_custom_call.1} parent=1 // loop_header
      %s16 = sphi 0, %s20
      %p17 = scmp.ge.s32.totalorder %s16, 4
      %s23 = sphi 0, %s35
      %s24 = sphi 0, %s31
      %s25 = sphi 0, %s23
      %s26 = sphi 0, %s24
      %s27 = sphi 0, %s25
      %s28 = sphi 0, %s26
      %s38 = sphi 0, %s40
      %s41 = sphi 0, %s38
      %s42 = sphi 0, %s41
      %s58 = sphi 0, %s42
      %s64 = sphi 0, %s66
      %s67 = sphi 0, %s64
      %s68 = sphi 0, %s67
      %s84 = sphi 0, %s68
      %s90 = sphi 0, %s92
      %s93 = sphi 0, %s90
      %s94 = sphi 0, %s93
      %s110 = sphi 0, %s94
      %s116 = sphi 0, %s118
      %s119 = sphi 0, %s116
      %s120 = sphi 0, %s119
      %s136 = sphi 0, %s120
      %s142 = sphi 0, %s144
      %s145 = sphi 0, %s142
      %s146 = sphi 0, %s145
      %s162 = sphi 0, %s146
      %s168 = sphi 0, %s170
      %s171 = sphi 0, %s168
      %s172 = sphi 0, %s171
      %s188 = sphi 0, %s172
      %s194 = sphi 0, %s196
      %s197 = sphi 0, %s194
      %s198 = sphi 0, %s197
      %s214 = sphi 0, %s198
      %s218 = sphi 0, %s218
      %s220 = sphi 0, %s218
      %s221 = sphi 0, %s220
      %s235 = sphi 0, %s221
      %s239 = sphi 0, %s239
      %s241 = sphi 0, %s239
      %s242 = sphi 0, %s241
      %s256 = sphi 0, %s242
      %s262 = sphi 0, %s264
      %s265 = sphi 0, %s262
      %s266 = sphi 0, %s265
      %s282 = sphi 0, %s266
    $region4: #{tpu_custom_call.1} parent=1 // loop_header_branch
      %19 = sbr.rel (%p17) target = $region8
    $region5: #{tpu_custom_call.1} parent=1 // loop_body
      %s21 = ssub.s32 %s16, 1
      %s22 = ssub.s32 %s16, 2
      %s29 = sadd.s32 1, %s24
      %p30 = scmp.ge.s32.totalorder %s29, 2
      %s31 = scalar_select %p30, 0, %s29
      %s32 = sadd.s32 1, %s23
      %s33 = scalar_select %p30, %s32, %s23
      %p34 = scmp.ge.s32.totalorder %s33, 1
      %s35 = scalar_select %p34, 0, %s33
      %s36 = ssub.s32 %s23, %s35
      %p37 = scmp.eq.s32.totalorder %s36, 0
      %s39 = sadd.s32 %s38, 1
      %s40 = scalar_select %p37, %s38, %s39
      %p43 = pneg %p37
      %p44 = scmp.eq.s32.totalorder %s16, 1
      %p45 = por %p43, %p44
      %p46 = scmp.ne.s32.totalorder %s38, %s41
      %p47 = scmp.eq.s32.totalorder %s16, 0
      %p48 = por %p46, %p47
      %p49 = scmp.ne.s32.totalorder %s38, %s41
      %p50 = scmp.eq.s32.totalorder %s21, 1
      %p51 = por %p49, %p50
      %p52 = scmp.ne.s32.totalorder %s41, %s42
      %p53 = scmp.eq.s32.totalorder %s21, 0
      %p54 = por %p52, %p53
      %p55 = scmp.ne.s32.totalorder %s41, %s42
      %p56 = scmp.eq.s32.totalorder %s22, 1
      %p57 = por %p55, %p56
      %p59 = scmp.ne.s32.totalorder %s42, %s58
      %p60 = scmp.eq.s32.totalorder %s22, 0
      %p61 = por %p59, %p60
      %s62 = ssub.s32 %s23, %s35
      %p63 = scmp.eq.s32.totalorder %s62, 0
      %s65 = sadd.s32 %s64, 1
      %s66 = scalar_select %p63, %s64, %s65
      %p69 = pneg %p63
      %p70 = scmp.eq.s32.totalorder %s16, 1
      %p71 = por %p69, %p70
      %p72 = scmp.ne.s32.totalorder %s64, %s67
      %p73 = scmp.eq.s32.totalorder %s16, 0
      %p74 = por %p72, %p73
      %p75 = scmp.ne.s32.totalorder %s64, %s67
      %p76 = scmp.eq.s32.totalorder %s21, 1
      %p77 = por %p75, %p76
      %p78 = scmp.ne.s32.totalorder %s67, %s68
      %p79 = scmp.eq.s32.totalorder %s21, 0
      %p80 = por %p78, %p79
      %p81 = scmp.ne.s32.totalorder %s67, %s68
      %p82 = scmp.eq.s32.totalorder %s22, 1
      %p83 = por %p81, %p82
      %p85 = scmp.ne.s32.totalorder %s68, %s84
      %p86 = scmp.eq.s32.totalorder %s22, 0
      %p87 = por %p85, %p86
      %s88 = ssub.s32 %s23, %s35
      %p89 = scmp.eq.s32.totalorder %s88, 0
      %s91 = sadd.s32 %s90, 1
      %s92 = scalar_select %p89, %s90, %s91
      %p95 = pneg %p89
      %p96 = scmp.eq.s32.totalorder %s16, 1
      %p97 = por %p95, %p96
      %p98 = scmp.ne.s32.totalorder %s90, %s93
      %p99 = scmp.eq.s32.totalorder %s16, 0
      %p100 = por %p98, %p99
      %p101 = scmp.ne.s32.totalorder %s90, %s93
      %p102 = scmp.eq.s32.totalorder %s21, 1
      %p103 = por %p101, %p102
      %p104 = scmp.ne.s32.totalorder %s93, %s94
      %p105 = scmp.eq.s32.totalorder %s21, 0
      %p106 = por %p104, %p105
      %p107 = scmp.ne.s32.totalorder %s93, %s94
      %p108 = scmp.eq.s32.totalorder %s22, 1
      %p109 = por %p107, %p108
      %p111 = scmp.ne.s32.totalorder %s94, %s110
      %p112 = scmp.eq.s32.totalorder %s22, 0
      %p113 = por %p111, %p112
      %s114 = ssub.s32 %s24, %s31
      %p115 = scmp.eq.s32.totalorder %s114, 0
      %s117 = sadd.s32 %s116, 1
      %s118 = scalar_select %p115, %s116, %s117
      %p121 = pneg %p115
      %p122 = scmp.eq.s32.totalorder %s16, 1
      %p123 = por %p121, %p122
      %p124 = scmp.ne.s32.totalorder %s116, %s119
      %p125 = scmp.eq.s32.totalorder %s16, 0
      %p126 = por %p124, %p125
      %p127 = scmp.ne.s32.totalorder %s116, %s119
      %p128 = scmp.eq.s32.totalorder %s21, 1
      %p129 = por %p127, %p128
      %p130 = scmp.ne.s32.totalorder %s119, %s120
      %p131 = scmp.eq.s32.totalorder %s21, 0
      %p132 = por %p130, %p131
      %p133 = scmp.ne.s32.totalorder %s119, %s120
      %p134 = scmp.eq.s32.totalorder %s22, 1
      %p135 = por %p133, %p134
      %p137 = scmp.ne.s32.totalorder %s120, %s136
      %p138 = scmp.eq.s32.totalorder %s22, 0
      %p139 = por %p137, %p138
      %s140 = ssub.s32 %s24, %s31
      %p141 = scmp.eq.s32.totalorder %s140, 0
      %s143 = sadd.s32 %s142, 1
      %s144 = scalar_select %p141, %s142, %s143
      %p147 = pneg %p141
      %p148 = scmp.eq.s32.totalorder %s16, 1
      %p149 = por %p147, %p148
      %p150 = scmp.ne.s32.totalorder %s142, %s145
      %p151 = scmp.eq.s32.totalorder %s16, 0
      %p152 = por %p150, %p151
      %p153 = scmp.ne.s32.totalorder %s142, %s145
      %p154 = scmp.eq.s32.totalorder %s21, 1
      %p155 = por %p153, %p154
      %p156 = scmp.ne.s32.totalorder %s145, %s146
      %p157 = scmp.eq.s32.totalorder %s21, 0
      %p158 = por %p156, %p157
      %p159 = scmp.ne.s32.totalorder %s145, %s146
      %p160 = scmp.eq.s32.totalorder %s22, 1
      %p161 = por %p159, %p160
      %p163 = scmp.ne.s32.totalorder %s146, %s162
      %p164 = scmp.eq.s32.totalorder %s22, 0
      %p165 = por %p163, %p164
      %s166 = ssub.s32 %s24, %s31
      %p167 = scmp.eq.s32.totalorder %s166, 0
      %s169 = sadd.s32 %s168, 1
      %s170 = scalar_select %p167, %s168, %s169
      %p173 = pneg %p167
      %p174 = scmp.eq.s32.totalorder %s16, 1
      %p175 = por %p173, %p174
      %p176 = scmp.ne.s32.totalorder %s168, %s171
      %p177 = scmp.eq.s32.totalorder %s16, 0
      %p178 = por %p176, %p177
      %p179 = scmp.ne.s32.totalorder %s168, %s171
      %p180 = scmp.eq.s32.totalorder %s21, 1
      %p181 = por %p179, %p180
      %p182 = scmp.ne.s32.totalorder %s171, %s172
      %p183 = scmp.eq.s32.totalorder %s21, 0
      %p184 = por %p182, %p183
      %p185 = scmp.ne.s32.totalorder %s171, %s172
      %p186 = scmp.eq.s32.totalorder %s22, 1
      %p187 = por %p185, %p186
      %p189 = scmp.ne.s32.totalorder %s172, %s188
      %p190 = scmp.eq.s32.totalorder %s22, 0
      %p191 = por %p189, %p190
      %s192 = ssub.s32 %s24, %s31
      %p193 = scmp.eq.s32.totalorder %s192, 0
      %s195 = sadd.s32 %s194, 1
      %s196 = scalar_select %p193, %s194, %s195
      %p199 = pneg %p193
      %p200 = scmp.eq.s32.totalorder %s16, 1
      %p201 = por %p199, %p200
      %p202 = scmp.ne.s32.totalorder %s194, %s197
      %p203 = scmp.eq.s32.totalorder %s16, 0
      %p204 = por %p202, %p203
      %p205 = scmp.ne.s32.totalorder %s194, %s197
      %p206 = scmp.eq.s32.totalorder %s21, 1
      %p207 = por %p205, %p206
      %p208 = scmp.ne.s32.totalorder %s197, %s198
      %p209 = scmp.eq.s32.totalorder %s21, 0
      %p210 = por %p208, %p209
      %p211 = scmp.ne.s32.totalorder %s197, %s198
      %p212 = scmp.eq.s32.totalorder %s22, 1
      %p213 = por %p211, %p212
      %p215 = scmp.ne.s32.totalorder %s198, %s214
      %p216 = scmp.eq.s32.totalorder %s22, 0
      %p217 = por %p215, %p216
      %s219 = sadd.s32 %s218, 1
      %p222 = scmp.eq.s32.totalorder %s16, 1
      %p223 = scmp.ne.s32.totalorder %s218, %s220
      %p224 = scmp.eq.s32.totalorder %s16, 0
      %p225 = por %p223, %p224
      %p226 = scmp.ne.s32.totalorder %s218, %s220
      %p227 = scmp.eq.s32.totalorder %s21, 1
      %p228 = por %p226, %p227
      %p229 = scmp.ne.s32.totalorder %s220, %s221
      %p230 = scmp.eq.s32.totalorder %s21, 0
      %p231 = por %p229, %p230
      %p232 = scmp.ne.s32.totalorder %s220, %s221
      %p233 = scmp.eq.s32.totalorder %s22, 1
      %p234 = por %p232, %p233
      %p236 = scmp.ne.s32.totalorder %s221, %s235
      %p237 = scmp.eq.s32.totalorder %s22, 0
      %p238 = por %p236, %p237
      %s240 = sadd.s32 %s239, 1
      %p243 = scmp.eq.s32.totalorder %s16, 1
      %p244 = scmp.ne.s32.totalorder %s239, %s241
      %p245 = scmp.eq.s32.totalorder %s16, 0
      %p246 = por %p244, %p245
      %p247 = scmp.ne.s32.totalorder %s239, %s241
      %p248 = scmp.eq.s32.totalorder %s21, 1
      %p249 = por %p247, %p248
      %p250 = scmp.ne.s32.totalorder %s241, %s242
      %p251 = scmp.eq.s32.totalorder %s21, 0
      %p252 = por %p250, %p251
      %p253 = scmp.ne.s32.totalorder %s241, %s242
      %p254 = scmp.eq.s32.totalorder %s22, 1
      %p255 = por %p253, %p254
      %p257 = scmp.ne.s32.totalorder %s242, %s256
      %p258 = scmp.eq.s32.totalorder %s22, 0
      %p259 = por %p257, %p258
      %s260 = ssub.s32 %s23, %s35
      %p261 = scmp.eq.s32.totalorder %s260, 0
      %s263 = sadd.s32 %s262, 1
      %s264 = scalar_select %p261, %s262, %s263
      %p267 = pneg %p261
      %p268 = scmp.eq.s32.totalorder %s16, 1
      %p269 = por %p267, %p268
      %p270 = scmp.ne.s32.totalorder %s262, %s265
      %p271 = scmp.eq.s32.totalorder %s16, 0
      %p272 = por %p270, %p271
      %p273 = scmp.ne.s32.totalorder %s262, %s265
      %p274 = scmp.eq.s32.totalorder %s21, 1
      %p275 = por %p273, %p274
      %p276 = scmp.ne.s32.totalorder %s265, %s266
      %p277 = scmp.eq.s32.totalorder %s21, 0
      %p278 = por %p276, %p277
      %p279 = scmp.ne.s32.totalorder %s265, %s266
      %p280 = scmp.eq.s32.totalorder %s22, 1
      %p281 = por %p279, %p280
      %p283 = scmp.ne.s32.totalorder %s266, %s282
      %p284 = scmp.eq.s32.totalorder %s22, 0
      %p285 = por %p283, %p284
      %p286 = scmp.le.s32.totalorder 1, %s16
      %p287 = scmp.lt.s32.totalorder %s16, 3
      %p288 = pnand %p286, %p287
      %p289 = pneg %p288
      // Predicated region
      $region9: #{tpu_custom_call.1} parent=5 // pred_check
        _
      $region10: #{tpu_custom_call.1} parent=5 // pred_check_branch
        %291 = sbr.rel (%p288) target = $region12
      $region11: #{tpu_custom_call.1} parent=5 // pred_region
        %s292 = ssub.s32 %s16, 1
        // Predicated region
        $region13: #{tpu_custom_call.1} parent=11 // pred_check
          %p293 = pneg %p54
        $region14: #{tpu_custom_call.1} parent=11 // pred_check_branch
          %295 = sbr.rel (%p293) target = $region16
        $region15: #{tpu_custom_call.1} parent=11 // pred_region
          %s296 = smul.u32 2, %s25
          %p297 = scmp.lt.s32.totalorder %s296, 1
          %s298 = scalar_select %p297, %s296, 1
          %s299 = smul.addr %s298, 4
          %s300 = scalar_lea.vmem %s0, %s299
          %s301 = smul.u32 2, %s25
        $region16: #{tpu_custom_call.1} parent=11 // pred_fallthru
          _
        // Predicated region
        $region17: #{tpu_custom_call.1} parent=11 // pred_check
          %p302 = pneg %p80
        $region18: #{tpu_custom_call.1} parent=11 // pred_check_branch
          %304 = sbr.rel (%p302) target = $region20
        $region19: #{tpu_custom_call.1} parent=11 // pred_region
          %s305 = smul.u32 2, %s25
          %p306 = scmp.lt.s32.totalorder %s305, 1
          %s307 = scalar_select %p306, %s305, 1
          %s308 = smul.addr %s307, 4
          %s309 = scalar_lea.vmem %s1, %s308
          %s310 = smul.u32 2, %s25
        $region20: #{tpu_custom_call.1} parent=11 // pred_fallthru
          _
        // Predicated region
        $region21: #{tpu_custom_call.1} parent=11 // pred_check
          %p311 = pneg %p106
        $region22: #{tpu_custom_call.1} parent=11 // pred_check_branch
          %313 = sbr.rel (%p311) target = $region24
        $region23: #{tpu_custom_call.1} parent=11 // pred_region
          %s314 = smul.u32 2, %s25
          %p315 = scmp.lt.s32.totalorder %s314, 1
          %s316 = scalar_select %p315, %s314, 1
          %s317 = smul.addr %s316, 4
          %s318 = scalar_lea.vmem %s2, %s317
          %s319 = smul.u32 2, %s25
        $region24: #{tpu_custom_call.1} parent=11 // pred_fallthru
          _
        // Predicated region
        $region25: #{tpu_custom_call.1} parent=11 // pred_check
          %p320 = pneg %p231
        $region26: #{tpu_custom_call.1} parent=11 // pred_check_branch
          %322 = sbr.rel (%p320) target = $region28
        $region27: #{tpu_custom_call.1} parent=11 // pred_region
          _
        $region28: #{tpu_custom_call.1} parent=11 // pred_fallthru
          _
        // Predicated region
        $region29: #{tpu_custom_call.1} parent=11 // pred_check
          %p323 = pneg %p252
        $region30: #{tpu_custom_call.1} parent=11 // pred_check_branch
          %325 = sbr.rel (%p323) target = $region32
        $region31: #{tpu_custom_call.1} parent=11 // pred_region
          _
        $region32: #{tpu_custom_call.1} parent=11 // pred_fallthru
          _
      $region12: #{tpu_custom_call.1} parent=5 // pred_fallthru
        _
      %p326 = scmp.lt.s32.totalorder %s16, 2
      // Predicated region
      $region33: #{tpu_custom_call.1} parent=5 // pred_check
        %p327 = pneg %p326
      $region34: #{tpu_custom_call.1} parent=5 // pred_check_branch
        %329 = sbr.rel (%p327) target = $region36
      $region35: #{tpu_custom_call.1} parent=5 // pred_region
        // Predicated region
        $region37: #{tpu_custom_call.1} parent=35 // pred_check
          %p330 = pneg %p126
        $region38: #{tpu_custom_call.1} parent=35 // pred_check_branch
          %332 = sbr.rel (%p330) target = $region40
        $region39: #{tpu_custom_call.1} parent=35 // pred_region
          %p333 = scmp.lt.s32.totalorder %s24, 1
          %s334 = scalar_select %p333, %s24, 1
          %s335 = smul.addr %s334, 4
          %s336 = smul.addr %s335, 4
          %s337 = scalar_lea.vmem %s3, %s336
        $region40: #{tpu_custom_call.1} parent=35 // pred_fallthru
          _
        // Predicated region
        $region41: #{tpu_custom_call.1} parent=35 // pred_check
          %p338 = pneg %p152
        $region42: #{tpu_custom_call.1} parent=35 // pred_check_branch
          %340 = sbr.rel (%p338) target = $region44
        $region43: #{tpu_custom_call.1} parent=35 // pred_region
          %p341 = scmp.lt.s32.totalorder %s24, 1
          %s342 = scalar_select %p341, %s24, 1
          %s343 = smul.addr %s342, 4
          %s344 = smul.addr %s343, 4
          %s345 = scalar_lea.vmem %s4, %s344
        $region44: #{tpu_custom_call.1} parent=35 // pred_fallthru
          _
        // Predicated region
        $region45: #{tpu_custom_call.1} parent=35 // pred_check
          %p346 = pneg %p178
        $region46: #{tpu_custom_call.1} parent=35 // pred_check_branch
          %348 = sbr.rel (%p346) target = $region48
        $region47: #{tpu_custom_call.1} parent=35 // pred_region
          %p349 = scmp.lt.s32.totalorder %s24, 1
          %s350 = scalar_select %p349, %s24, 1
          %s351 = smul.addr %s350, 4
          %s352 = smul.addr %s351, 4
          %s353 = scalar_lea.vmem %s5, %s352
        $region48: #{tpu_custom_call.1} parent=35 // pred_fallthru
          _
        // Predicated region
        $region49: #{tpu_custom_call.1} parent=35 // pred_check
          %p354 = pneg %p204
        $region50: #{tpu_custom_call.1} parent=35 // pred_check_branch
          %356 = sbr.rel (%p354) target = $region52
        $region51: #{tpu_custom_call.1} parent=35 // pred_region
          %p357 = scmp.lt.s32.totalorder %s24, 1
          %s358 = scalar_select %p357, %s24, 1
          %s359 = smul.addr %s358, 2
          %s360 = smul.addr %s359, 4
          %s361 = scalar_lea.vmem %s6, %s360
        $region52: #{tpu_custom_call.1} parent=35 // pred_fallthru
          _
      $region36: #{tpu_custom_call.1} parent=5 // pred_fallthru
        _
      %p362 = scmp.le.s32.totalorder 1, %s16
      %p363 = scmp.lt.s32.totalorder %s16, 3
      %p364 = pnand %p362, %p363
      %p365 = pneg %p364
      // Predicated region
      $region53: #{tpu_custom_call.1} parent=5 // pred_check
        _
      $region54: #{tpu_custom_call.1} parent=5 // pred_check_branch
        %367 = sbr.rel (%p364) target = $region56
      $region55: #{tpu_custom_call.1} parent=5 // pred_region
        %s368 = ssub.s32 %s16, 1
        %s369 = smul.u32 2, %s25
        %p370 = scmp.lt.s32.totalorder %s369, 1
        %s371 = scalar_select %p370, %s369, 1
        %s372 = smul.addr %s371, 4
        %s373 = scalar_lea.vmem %s0, %s372
        %p374 = pneg %p54
        %p375 = pneg %p51
        %s376 = smul.u32 2, %s25
        %p377 = scmp.lt.s32.totalorder %s376, 1
        %s378 = scalar_select %p377, %s376, 1
        %s379 = smul.addr %s378, 4
        %s380 = scalar_lea.vmem %s1, %s379
        %p381 = pneg %p80
        %p382 = pneg %p77
        %s383 = smul.u32 2, %s25
        %p384 = scmp.lt.s32.totalorder %s383, 1
        %s385 = scalar_select %p384, %s383, 1
        %s386 = smul.addr %s385, 4
        %s387 = scalar_lea.vmem %s2, %s386
        %p388 = pneg %p106
        %p389 = pneg %p103
        %p390 = scmp.lt.s32.totalorder %s26, 1
        %s391 = scalar_select %p390, %s26, 1
        %s392 = smul.addr %s391, 4
        %s393 = smul.addr %s392, 4
        %s394 = scalar_lea.vmem %s3, %s393
        %p395 = pneg %p132
        %p396 = pneg %p129
        %p397 = scmp.lt.s32.totalorder %s26, 1
        %s398 = scalar_select %p397, %s26, 1
        %s399 = smul.addr %s398, 4
        %s400 = smul.addr %s399, 4
        %s401 = scalar_lea.vmem %s4, %s400
        %p402 = pneg %p158
        %p403 = pneg %p155
        %p404 = scmp.lt.s32.totalorder %s26, 1
        %s405 = scalar_select %p404, %s26, 1
        %s406 = smul.addr %s405, 4
        %s407 = smul.addr %s406, 4
        %s408 = scalar_lea.vmem %s5, %s407
        %p409 = pneg %p184
        %p410 = pneg %p181
        %p411 = scmp.lt.s32.totalorder %s26, 1
        %s412 = scalar_select %p411, %s26, 1
        %s413 = smul.addr %s412, 2
        %s414 = smul.addr %s413, 4
        %s415 = scalar_lea.vmem %s6, %s414
        %p416 = pneg %p210
        %p417 = pneg %p207
        %p418 = pneg %p231
        %p419 = pneg %p228
        %p420 = pneg %p252
        %p421 = pneg %p249
        %p422 = pneg %p278
        %p423 = pneg %p275
        %s424 = smul.u32 2, %s25
        %p425 = scmp.lt.s32.totalorder %s424, 1
        %s426 = scalar_select %p425, %s424, 1
        %s427 = smul.addr %s426, 4
        %s428 = scalar_lea.vmem %s0, %s427
        %s429 = smul.u32 2, %s25
        %s430 = smul.u32 2, %s25
        %p431 = scmp.lt.s32.totalorder %s430, 1
        %s432 = scalar_select %p431, %s430, 1
        %s433 = smul.addr %s432, 4
        %s434 = scalar_lea.vmem %s1, %s433
        %s435 = smul.u32 2, %s25
        %s436 = smul.u32 2, %s25
        %p437 = scmp.lt.s32.totalorder %s436, 1
        %s438 = scalar_select %p437, %s436, 1
        %s439 = smul.addr %s438, 4
        %s440 = scalar_lea.vmem %s2, %s439
        %s441 = smul.u32 2, %s25
        %p442 = scmp.lt.s32.totalorder %s26, 1
        %s443 = scalar_select %p442, %s26, 1
        %s444 = smul.addr %s443, 4
        %s445 = smul.addr %s444, 4
        %s446 = scalar_lea.vmem %s3, %s445
        %p447 = scmp.lt.s32.totalorder %s26, 1
        %s448 = scalar_select %p447, %s26, 1
        %s449 = smul.addr %s448, 4
        %s450 = smul.addr %s449, 4
        %s451 = scalar_lea.vmem %s4, %s450
        %p452 = scmp.lt.s32.totalorder %s26, 1
        %s453 = scalar_select %p452, %s26, 1
        %s454 = smul.addr %s453, 4
        %s455 = smul.addr %s454, 4
        %s456 = scalar_lea.vmem %s5, %s455
        %p457 = scmp.lt.s32.totalorder %s26, 1
        %s458 = scalar_select %p457, %s26, 1
        %s459 = smul.addr %s458, 2
        %s460 = smul.addr %s459, 4
        %s461 = scalar_lea.vmem %s6, %s460
        %s462 = smul.u32 2, %s25
        %p464 = scmp.eq.s32.totalorder %s26, 0
        // Predicated region
        $region57: #{tpu_custom_call.1} parent=55 // pred_check
          %p465 = pneg %p464
        $region58: #{tpu_custom_call.1} parent=55 // pred_check_branch
          %467 = sbr.rel (%p465) target = $region60
        $region59: #{tpu_custom_call.1} parent=55 // pred_region
          %vm468 = vcmask 261120
          %469 = vst.msk [vmem:[#allocation2] sm:$0xff] %vm468, 0.0
          %470 = vst.msk [vmem:[#allocation2 + $0x8] sm:$0xff] %vm468, 0.0
        $region60: #{tpu_custom_call.1} parent=55 // pred_fallthru
          _
        %v471 = vld [vmem:[%s446] sm:$0xf]
        %v472 = vld [vmem:[%s446 + $0x4] sm:$0xf]
        %v473 = vld [vmem:[%s446 + $0x8] sm:$0xf]
        %v474 = vld [vmem:[%s446 + $0xc] sm:$0xf]
        %v475 = vld [vmem:[%s451] sm:$0xf]
        %v476 = vld [vmem:[%s451 + $0x4] sm:$0xf]
        %v477 = vld [vmem:[%s451 + $0x8] sm:$0xf]
        %v478 = vld [vmem:[%s451 + $0xc] sm:$0xf]
        %v479 = vld [vmem:[%s456] sm:$0xf]
        %v480 = vld [vmem:[%s456 + $0x4] sm:$0xf]
        %v481 = vld [vmem:[%s456 + $0x8] sm:$0xf]
        %v482 = vld [vmem:[%s456 + $0xc] sm:$0xf]
        %v483 = vld [vmem:[%s461] sm:$0xf]
        %v484 = vld [vmem:[%s461 + $0x4] sm:$0xf]
        %v485 = vld [vmem:[%s428] sm:$0xf]
        %v486 = vld [vmem:[%s428 + $0x4] sm:$0xf]
        %v487 = vld [vmem:[%s434] sm:$0xf]
        %v488 = vld [vmem:[%s434 + $0x4] sm:$0xf]
        %v489 = vld [vmem:[%s440] sm:$0xf]
        %v490 = vld [vmem:[%s440 + $0x4] sm:$0xf]
        %v493 = vunpack.c.l.b16 %v485
        %v494 = vunpack.c.l.b16 %v486
        %v495 = vpack.c.b16 %v494, %v493
        %v500 = vunpack.c.l.b16 %v471
        %v501 = vunpack.c.l.b16 %v472
        %v502 = vunpack.c.l.b16 %v473
        %v503 = vunpack.c.l.b16 %v474
        %v504 = vpack.c.b16 %v501, %v500
        %v505 = vpack.c.b16 %v503, %v502
        %vm508 = vcmask 261120
        %v510 = vsel %vm508, %v495, 0
        %512 = vmatprep.subr.bf16.mxu0 0
        %513 = vmatpush1.bf16.msra.mxu0 0
        %514 = vmatprep.subr.bf16.mxu0 0
        %515 = vmatpush1.bf16.msra.mxu0 0
        %516 = vmatprep.subr.bf16.mxu0 0
        %517 = vmatpush1.bf16.msra.mxu0 0
        %518 = vmatprep.subr.bf16.mxu0 0
        %519 = vmatpush1.bf16.msra.mxu0 0
        %520 = vmatprep.subr.bf16.mxu0 0
        %521 = vmatpush1.bf16.msra.mxu0 0
        %522 = vmatprep.subr.bf16.mxu0 0
        %523 = vmatpush1.bf16.msra.mxu0 0
        %524 = vmatprep.subr.bf16.mxu0 0
        %525 = vmatpush1.bf16.msra.mxu0 %v505
        %526 = vmatprep.subr.bf16.mxu0 0
        %527 = vmatpush1.bf16.msra.mxu0 %v504
        %528 = vmatprep.subr.bf16.mxu0 0
        %529 = vmatpush2.bf16.msra.mxu0 0
        %530 = vmatprep.subr.bf16.mxu0 0
        %531 = vmatpush2.bf16.msra.mxu0 0
        %532 = vmatprep.subr.bf16.mxu0 0
        %533 = vmatpush2.bf16.msra.mxu0 0
        %534 = vmatprep.subr.bf16.mxu0 0
        %535 = vmatpush2.bf16.msra.mxu0 0
        %536 = vmatprep.subr.bf16.mxu0 0
        %537 = vmatpush2.bf16.msra.mxu0 0
        %538 = vmatprep.subr.bf16.mxu0 0
        %539 = vmatpush2.bf16.msra.mxu0 0
        %540 = vmatprep.subr.bf16.mxu0 0
        %541 = vmatpush2.bf16.msra.mxu0 0
        %542 = vmatprep.subr.bf16.mxu0 0
        %543 = vmatpush2.bf16.msra.mxu0 0
        %544 = vmatprep.mubr.bf16.mxu0 0
        %545 = vmatmul.mubr.bf16.gmra.mxu0 %v510
        %v546 = vpop.f32.mrf.mxu0
        %v547 = vadd.f32 0.0, %v546
        %v548 = vpop.f32.mrf.mxu0
        %v549 = vpop.f32.mrf.mxu0
        %v550 = vadd.f32 0.0, %v549
        %v551 = vpop.f32.mrf.mxu0
        %552 = vdwg.mxu0
        %v555 = vunpack.c.l.b16 %v487
        %v556 = vunpack.c.l.b16 %v488
        %v557 = vpack.c.b16 %v556, %v555
        %v562 = vunpack.c.l.b16 %v475
        %v563 = vunpack.c.l.b16 %v476
        %v564 = vunpack.c.l.b16 %v477
        %v565 = vunpack.c.l.b16 %v478
        %v566 = vpack.c.b16 %v563, %v562
        %v567 = vpack.c.b16 %v565, %v564
        %v571 = vsel %vm508, %v557, 0
        %573 = vmatprep.subr.bf16.mxu0 0
        %574 = vmatpush1.bf16.msra.mxu0 0
        %575 = vmatprep.subr.bf16.mxu0 0
        %576 = vmatpush1.bf16.msra.mxu0 0
        %577 = vmatprep.subr.bf16.mxu0 0
        %578 = vmatpush1.bf16.msra.mxu0 0
        %579 = vmatprep.subr.bf16.mxu0 0
        %580 = vmatpush1.bf16.msra.mxu0 0
        %581 = vmatprep.subr.bf16.mxu0 0
        %582 = vmatpush1.bf16.msra.mxu0 0
        %583 = vmatprep.subr.bf16.mxu0 0
        %584 = vmatpush1.bf16.msra.mxu0 0
        %585 = vmatprep.subr.bf16.mxu0 0
        %586 = vmatpush1.bf16.msra.mxu0 %v567
        %587 = vmatprep.subr.bf16.mxu0 0
        %588 = vmatpush1.bf16.msra.mxu0 %v566
        %589 = vmatprep.subr.bf16.mxu0 0
        %590 = vmatpush2.bf16.msra.mxu0 0
        %591 = vmatprep.subr.bf16.mxu0 0
        %592 = vmatpush2.bf16.msra.mxu0 0
        %593 = vmatprep.subr.bf16.mxu0 0
        %594 = vmatpush2.bf16.msra.mxu0 0
        %595 = vmatprep.subr.bf16.mxu0 0
        %596 = vmatpush2.bf16.msra.mxu0 0
        %597 = vmatprep.subr.bf16.mxu0 0
        %598 = vmatpush2.bf16.msra.mxu0 0
        %599 = vmatprep.subr.bf16.mxu0 0
        %600 = vmatpush2.bf16.msra.mxu0 0
        %601 = vmatprep.subr.bf16.mxu0 0
        %602 = vmatpush2.bf16.msra.mxu0 0
        %603 = vmatprep.subr.bf16.mxu0 0
        %604 = vmatpush2.bf16.msra.mxu0 0
        %605 = vmatprep.mubr.bf16.mxu0 0
        %606 = vmatmul.mubr.bf16.gmra.mxu0 %v571
        %v607 = vpop.f32.mrf.mxu0
        %v608 = vadd.f32 0.0, %v607
        %v609 = vpop.f32.mrf.mxu0
        %v610 = vpop.f32.mrf.mxu0
        %v611 = vadd.f32 0.0, %v610
        %v612 = vpop.f32.mrf.mxu0
        %613 = vdwg.mxu0
        %v616 = vunpack.c.l.b16 %v489
        %v617 = vunpack.c.l.b16 %v490
        %v618 = vpack.c.b16 %v617, %v616
        %v623 = vunpack.c.l.b16 %v479
        %v624 = vunpack.c.l.b16 %v480
        %v625 = vunpack.c.l.b16 %v481
        %v626 = vunpack.c.l.b16 %v482
        %v627 = vpack.c.b16 %v624, %v623
        %v628 = vpack.c.b16 %v626, %v625
        %v632 = vsel %vm508, %v618, 0
        %634 = vmatprep.subr.bf16.mxu0 0
        %635 = vmatpush1.bf16.msra.mxu0 0
        %636 = vmatprep.subr.bf16.mxu0 0
        %637 = vmatpush1.bf16.msra.mxu0 0
        %638 = vmatprep.subr.bf16.mxu0 0
        %639 = vmatpush1.bf16.msra.mxu0 0
        %640 = vmatprep.subr.bf16.mxu0 0
        %641 = vmatpush1.bf16.msra.mxu0 0
        %642 = vmatprep.subr.bf16.mxu0 0
        %643 = vmatpush1.bf16.msra.mxu0 0
        %644 = vmatprep.subr.bf16.mxu0 0
        %645 = vmatpush1.bf16.msra.mxu0 0
        %646 = vmatprep.subr.bf16.mxu0 0
        %647 = vmatpush1.bf16.msra.mxu0 %v628
        %648 = vmatprep.subr.bf16.mxu0 0
        %649 = vmatpush1.bf16.msra.mxu0 %v627
        %650 = vmatprep.subr.bf16.mxu0 0
        %651 = vmatpush2.bf16.msra.mxu0 0
        %652 = vmatprep.subr.bf16.mxu0 0
        %653 = vmatpush2.bf16.msra.mxu0 0
        %654 = vmatprep.subr.bf16.mxu0 0
        %655 = vmatpush2.bf16.msra.mxu0 0
        %656 = vmatprep.subr.bf16.mxu0 0
        %657 = vmatpush2.bf16.msra.mxu0 0
        %658 = vmatprep.subr.bf16.mxu0 0
        %659 = vmatpush2.bf16.msra.mxu0 0
        %660 = vmatprep.subr.bf16.mxu0 0
        %661 = vmatpush2.bf16.msra.mxu0 0
        %662 = vmatprep.subr.bf16.mxu0 0
        %663 = vmatpush2.bf16.msra.mxu0 0
        %664 = vmatprep.subr.bf16.mxu0 0
        %665 = vmatpush2.bf16.msra.mxu0 0
        %666 = vmatprep.mubr.bf16.mxu0 0
        %667 = vmatmul.mubr.bf16.gmra.mxu0 %v632
        %v668 = vpop.f32.mrf.mxu0
        %v669 = vadd.f32 0.0, %v668
        %v670 = vpop.f32.mrf.mxu0
        %v671 = vpop.f32.mrf.mxu0
        %v672 = vadd.f32 0.0, %v671
        %v673 = vpop.f32.mrf.mxu0
        %674 = vdwg.mxu0
        %v675 = vmul.f32 %v547, 0.25
        %v676 = vmul.f32 %v550, 0.25
        %v677 = vpack.c.bf16 %v675, %v675
        %v678 = vpack.c.bf16 %v676, %v676
        %v679 = vpack.c.bf16 %v608, %v608
        %v680 = vpack.c.bf16 %v611, %v611
        %vm681 = vcmask 130048
        %v683 = vsel %vm681, %v677, 0
        %v686 = vsel %vm681, %v679, 0
        %688 = vmatprep.subr.bf16.mxu0 0
        %689 = vmatpush1.bf16.xpose.msra.mxu0 0
        %690 = vmatprep.subr.bf16.mxu0 0
        %691 = vmatpush1.bf16.xpose.msra.mxu0 0
        %692 = vmatprep.subr.bf16.mxu0 0
        %693 = vmatpush1.bf16.xpose.msra.mxu0 0
        %694 = vmatprep.subr.bf16.mxu0 0
        %695 = vmatpush1.bf16.xpose.msra.mxu0 0
        %696 = vmatprep.subr.bf16.mxu0 0
        %697 = vmatpush1.bf16.xpose.msra.mxu0 0
        %698 = vmatprep.subr.bf16.mxu0 0
        %699 = vmatpush1.bf16.xpose.msra.mxu0 0
        %700 = vmatprep.subr.bf16.mxu0 0
        %701 = vmatpush1.bf16.xpose.msra.mxu0 0
        %702 = vmatprep.subr.bf16.mxu0 0
        %703 = vmatpush1.bf16.xpose.msra.mxu0 %v686
        %704 = vmatprep.subr.bf16.mxu0 0
        %705 = vmatpush2.bf16.xpose.msra.mxu0 0
        %706 = vmatprep.subr.bf16.mxu0 0
        %707 = vmatpush2.bf16.xpose.msra.mxu0 0
        %708 = vmatprep.subr.bf16.mxu0 0
        %709 = vmatpush2.bf16.xpose.msra.mxu0 0
        %710 = vmatprep.subr.bf16.mxu0 0
        %711 = vmatpush2.bf16.xpose.msra.mxu0 0
        %712 = vmatprep.subr.bf16.mxu0 0
        %713 = vmatpush2.bf16.xpose.msra.mxu0 0
        %714 = vmatprep.subr.bf16.mxu0 0
        %715 = vmatpush2.bf16.xpose.msra.mxu0 0
        %716 = vmatprep.subr.bf16.mxu0 0
        %717 = vmatpush2.bf16.xpose.msra.mxu0 0
        %718 = vmatprep.subr.bf16.mxu0 0
        %719 = vmatpush2.bf16.xpose.msra.mxu0 0
        %720 = vmatprep.mubr.bf16.mxu0 0
        %721 = vmatmul.mubr.bf16.gmra.mxu0 %v683
        %v722 = vpop.f32.mrf.mxu0
        %v723 = vadd.f32 0.0, %v722
        %v724 = vpop.f32.mrf.mxu0
        %v725 = vpop.f32.mrf.mxu0
        %v726 = vpop.f32.mrf.mxu0
        %727 = vdwg.mxu0
        %v729 = vsel %vm681, %v678, 0
        %v732 = vsel %vm681, %v680, 0
        %734 = vmatprep.subr.bf16.mxu0 0
        %735 = vmatpush1.bf16.xpose.msra.mxu0 0
        %736 = vmatprep.subr.bf16.mxu0 0
        %737 = vmatpush1.bf16.xpose.msra.mxu0 0
        %738 = vmatprep.subr.bf16.mxu0 0
        %739 = vmatpush1.bf16.xpose.msra.mxu0 0
        %740 = vmatprep.subr.bf16.mxu0 0
        %741 = vmatpush1.bf16.xpose.msra.mxu0 0
        %742 = vmatprep.subr.bf16.mxu0 0
        %743 = vmatpush1.bf16.xpose.msra.mxu0 0
        %744 = vmatprep.subr.bf16.mxu0 0
        %745 = vmatpush1.bf16.xpose.msra.mxu0 0
        %746 = vmatprep.subr.bf16.mxu0 0
        %747 = vmatpush1.bf16.xpose.msra.mxu0 0
        %748 = vmatprep.subr.bf16.mxu0 0
        %749 = vmatpush1.bf16.xpose.msra.mxu0 %v732
        %750 = vmatprep.subr.bf16.mxu0 0
        %751 = vmatpush2.bf16.xpose.msra.mxu0 0
        %752 = vmatprep.subr.bf16.mxu0 0
        %753 = vmatpush2.bf16.xpose.msra.mxu0 0
        %754 = vmatprep.subr.bf16.mxu0 0
        %755 = vmatpush2.bf16.xpose.msra.mxu0 0
        %756 = vmatprep.subr.bf16.mxu0 0
        %757 = vmatpush2.bf16.xpose.msra.mxu0 0
        %758 = vmatprep.subr.bf16.mxu0 0
        %759 = vmatpush2.bf16.xpose.msra.mxu0 0
        %760 = vmatprep.subr.bf16.mxu0 0
        %761 = vmatpush2.bf16.xpose.msra.mxu0 0
        %762 = vmatprep.subr.bf16.mxu0 0
        %763 = vmatpush2.bf16.xpose.msra.mxu0 0
        %764 = vmatprep.subr.bf16.mxu0 0
        %765 = vmatpush2.bf16.xpose.msra.mxu0 0
        %766 = vmatprep.mubr.bf16.mxu0 0
        %767 = vmatmul.mubr.bf16.gmra.mxu0 %v729
        %v768 = vpop.f32.mrf.mxu0
        %v769 = vadd.f32 0.0, %v768
        %v770 = vpop.f32.mrf.mxu0
        %v771 = vpop.f32.mrf.mxu0
        %v772 = vpop.f32.mrf.mxu0
        %773 = vdwg.mxu0
        %vm774 = vcmask 64512
        %v775 = vsel %vm774, %v723, -inf
        %776 = vmax.xlane.f32.xlu0 %v775
        %v777 = vpop.xlane.xlu0 %776
        %v778 = vsel %vm774, %v769, -inf
        %779 = vmax.xlane.f32.xlu0 %v778
        %v780 = vpop.xlane.xlu0 %779
        %v781 = vsub.f32 %v723, %v777
        %v782 = vsub.f32 %v769, %v780
        %v783 = vmul.f32 %v781, 1.442695
        %v784 = vpow.pop %v783
        %v785 = vmul.f32 %v782, 1.442695
        %v786 = vpow.pop %v785
        %v787 = vsel %vm774, %v784, 0.0
        %788 = vadd.xlane.f32.xlu0 %v787
        %v789 = vpop.xlane.xlu0 %788
        %v790 = vsel %vm774, %v786, 0.0
        %791 = vadd.xlane.f32.xlu0 %v790
        %v792 = vpop.xlane.xlu0 %791
        %v793 = vrcp.pop %v789
        %v794 = vrcp.pop %v792
        %v795 = vmul.f32 %v784, %v793
        %v796 = vmul.f32 %v786, %v794
        %v797 = vpack.c.bf16 %v795, %v795
        %v798 = vpack.c.bf16 %v796, %v796
        %v799 = vpack.c.bf16 %v669, %v669
        %v800 = vpack.c.bf16 %v672, %v672
        %v802 = vsel %vm774, %v797, 0
        %vm804 = vcmask 1043456
        %v806 = vsel %vm804, %v799, 0
        %808 = vmatprep.subr.bf16.mxu0 0
        %809 = vmatpush1.bf16.msra.mxu0 0
        %810 = vmatprep.subr.bf16.mxu0 0
        %811 = vmatpush1.bf16.msra.mxu0 0
        %812 = vmatprep.subr.bf16.mxu0 0
        %813 = vmatpush1.bf16.msra.mxu0 0
        %814 = vmatprep.subr.bf16.mxu0 0
        %815 = vmatpush1.bf16.msra.mxu0 0
        %816 = vmatprep.subr.bf16.mxu0 0
        %817 = vmatpush1.bf16.msra.mxu0 0
        %818 = vmatprep.subr.bf16.mxu0 0
        %819 = vmatpush1.bf16.msra.mxu0 0
        %820 = vmatprep.subr.bf16.mxu0 0
        %821 = vmatpush1.bf16.msra.mxu0 0
        %822 = vmatprep.subr.bf16.mxu0 0
        %823 = vmatpush1.bf16.msra.mxu0 %v806
        %824 = vmatprep.subr.bf16.mxu0 0
        %825 = vmatpush2.bf16.msra.mxu0 0
        %826 = vmatprep.subr.bf16.mxu0 0
        %827 = vmatpush2.bf16.msra.mxu0 0
        %828 = vmatprep.subr.bf16.mxu0 0
        %829 = vmatpush2.bf16.msra.mxu0 0
        %830 = vmatprep.subr.bf16.mxu0 0
        %831 = vmatpush2.bf16.msra.mxu0 0
        %832 = vmatprep.subr.bf16.mxu0 0
        %833 = vmatpush2.bf16.msra.mxu0 0
        %834 = vmatprep.subr.bf16.mxu0 0
        %835 = vmatpush2.bf16.msra.mxu0 0
        %836 = vmatprep.subr.bf16.mxu0 0
        %837 = vmatpush2.bf16.msra.mxu0 0
        %838 = vmatprep.subr.bf16.mxu0 0
        %839 = vmatpush2.bf16.msra.mxu0 0
        %840 = vmatprep.mubr.bf16.mxu0 0
        %841 = vmatmul.mubr.bf16.gmra.mxu0 %v802
        %v842 = vpop.f32.mrf.mxu0
        %v843 = vadd.f32 0.0, %v842
        %v844 = vpop.f32.mrf.mxu0
        %v845 = vpop.f32.mrf.mxu0
        %v846 = vpop.f32.mrf.mxu0
        %847 = vdwg.mxu0
        %v849 = vsel %vm774, %v798, 0
        %v852 = vsel %vm804, %v800, 0
        %854 = vmatprep.subr.bf16.mxu0 0
        %855 = vmatpush1.bf16.msra.mxu0 0
        %856 = vmatprep.subr.bf16.mxu0 0
        %857 = vmatpush1.bf16.msra.mxu0 0
        %858 = vmatprep.subr.bf16.mxu0 0
        %859 = vmatpush1.bf16.msra.mxu0 0
        %860 = vmatprep.subr.bf16.mxu0 0
        %861 = vmatpush1.bf16.msra.mxu0 0
        %862 = vmatprep.subr.bf16.mxu0 0
        %863 = vmatpush1.bf16.msra.mxu0 0
        %864 = vmatprep.subr.bf16.mxu0 0
        %865 = vmatpush1.bf16.msra.mxu0 0
        %866 = vmatprep.subr.bf16.mxu0 0
        %867 = vmatpush1.bf16.msra.mxu0 0
        %868 = vmatprep.subr.bf16.mxu0 0
        %869 = vmatpush1.bf16.msra.mxu0 %v852
        %870 = vmatprep.subr.bf16.mxu0 0
        %871 = vmatpush2.bf16.msra.mxu0 0
        %872 = vmatprep.subr.bf16.mxu0 0
        %873 = vmatpush2.bf16.msra.mxu0 0
        %874 = vmatprep.subr.bf16.mxu0 0
        %875 = vmatpush2.bf16.msra.mxu0 0
        %876 = vmatprep.subr.bf16.mxu0 0
        %877 = vmatpush2.bf16.msra.mxu0 0
        %878 = vmatprep.subr.bf16.mxu0 0
        %879 = vmatpush2.bf16.msra.mxu0 0
        %880 = vmatprep.subr.bf16.mxu0 0
        %881 = vmatpush2.bf16.msra.mxu0 0
        %882 = vmatprep.subr.bf16.mxu0 0
        %883 = vmatpush2.bf16.msra.mxu0 0
        %884 = vmatprep.subr.bf16.mxu0 0
        %885 = vmatpush2.bf16.msra.mxu0 0
        %886 = vmatprep.mubr.bf16.mxu0 0
        %887 = vmatmul.mubr.bf16.gmra.mxu0 %v849
        %v888 = vpop.f32.mrf.mxu0
        %v889 = vadd.f32 0.0, %v888
        %v890 = vpop.f32.mrf.mxu0
        %v891 = vpop.f32.mrf.mxu0
        %v892 = vpop.f32.mrf.mxu0
        %893 = vdwg.mxu0
        %v894 = vld [vmem:[#allocation2] sm:$0xff]
        %v895 = vld [vmem:[#allocation2 + $0x8] sm:$0xff]
        %v896 = vpack.c.bf16 %v889, %v843
        %v899 = vunpack.c.l.b16 %v483
        %v900 = vunpack.c.l.b16 %v484
        %v901 = vpack.c.b16 %v900, %v899
        %v904 = vsel %vm681, %v896, 0
        %906 = vmatprep.subr.bf16.mxu0 0
        %907 = vmatpush1.bf16.msra.mxu0 0
        %908 = vmatprep.subr.bf16.mxu0 0
        %909 = vmatpush1.bf16.msra.mxu0 0
        %910 = vmatprep.subr.bf16.mxu0 0
        %911 = vmatpush1.bf16.msra.mxu0 0
        %912 = vmatprep.subr.bf16.mxu0 0
        %913 = vmatpush1.bf16.msra.mxu0 0
        %914 = vmatprep.subr.bf16.mxu0 0
        %915 = vmatpush1.bf16.msra.mxu0 0
        %916 = vmatprep.subr.bf16.mxu0 0
        %917 = vmatpush1.bf16.msra.mxu0 0
        %918 = vmatprep.subr.bf16.mxu0 0
        %919 = vmatpush1.bf16.msra.mxu0 0
        %920 = vmatprep.subr.bf16.mxu0 0
        %921 = vmatpush1.bf16.msra.mxu0 %v901
        %922 = vmatprep.subr.bf16.mxu0 0
        %923 = vmatpush2.bf16.msra.mxu0 0
        %924 = vmatprep.subr.bf16.mxu0 0
        %925 = vmatpush2.bf16.msra.mxu0 0
        %926 = vmatprep.subr.bf16.mxu0 0
        %927 = vmatpush2.bf16.msra.mxu0 0
        %928 = vmatprep.subr.bf16.mxu0 0
        %929 = vmatpush2.bf16.msra.mxu0 0
        %930 = vmatprep.subr.bf16.mxu0 0
        %931 = vmatpush2.bf16.msra.mxu0 0
        %932 = vmatprep.subr.bf16.mxu0 0
        %933 = vmatpush2.bf16.msra.mxu0 0
        %934 = vmatprep.subr.bf16.mxu0 0
        %935 = vmatpush2.bf16.msra.mxu0 0
        %936 = vmatprep.subr.bf16.mxu0 0
        %937 = vmatpush2.bf16.msra.mxu0 0
        %938 = vmatprep.mubr.bf16.mxu0 0
        %939 = vmatmul.mubr.bf16.gmra.mxu0 %v904
        %v940 = vpop.f32.mrf.mxu0
        %v941 = vadd.f32 0.0, %v940
        %v942 = vpop.f32.mrf.mxu0
        %v943 = vpop.f32.mrf.mxu0
        %v944 = vadd.f32 0.0, %v943
        %v945 = vpop.f32.mrf.mxu0
        %946 = vdwg.mxu0
        %v947 = vadd.f32 %v894, %v941
        %v948 = vadd.f32 %v895, %v944
        %949 = vst.msk [vmem:[#allocation2] sm:$0xff] %vm508, %v947
        %950 = vst.msk [vmem:[#allocation2 + $0x8] sm:$0xff] %vm508, %v948
        %p951 = scmp.eq.s32.totalorder %s26, 1
        // Predicated region
        $region61: #{tpu_custom_call.1} parent=55 // pred_check
          %p952 = pneg %p951
        $region62: #{tpu_custom_call.1} parent=55 // pred_check_branch
          %954 = sbr.rel (%p952) target = $region64
        $region63: #{tpu_custom_call.1} parent=55 // pred_region
          %v955 = vld [vmem:[#allocation2] sm:$0xff]
          %v956 = vld [vmem:[#allocation2 + $0x8] sm:$0xff]
          %v957 = vsel %vm508, %v955, 0.0
          %958 = vadd.xlane.f32.xlu0 %v957
          %v959 = vpop.xlane.xlu0 %958
          %v960 = vsel %vm508, %v956, 0.0
          %961 = vadd.xlane.f32.xlu0 %v960
          %v962 = vpop.xlane.xlu0 %961
          %v963 = vrcp.pop 32.0
          %v964 = vmul.f32 %v959, %v963
          %v965 = vmul.f32 %v962, %v963
          %v966 = vsub.f32 %v955, %v964
          %v967 = vsub.f32 %v956, %v965
          %v968 = vmul.f32 %v966, %v966
          %v969 = vmul.f32 %v967, %v967
          %v970 = vsel %vm508, %v968, 0.0
          %971 = vadd.xlane.f32.xlu0 %v970
          %v972 = vpop.xlane.xlu0 %971
          %v973 = vsel %vm508, %v969, 0.0
          %974 = vadd.xlane.f32.xlu0 %v973
          %v975 = vpop.xlane.xlu0 %974
          %v976 = vmul.f32 %v972, %v963
          %v977 = vmul.f32 %v975, %v963
          %v978 = vadd.f32 %v976, 2.5e-07
          %v979 = vadd.f32 %v977, 2.5e-07
          %v980 = vrsqrt.pop %v978
          %v981 = vrsqrt.pop %v979
          %v982 = vmul.f32 %v966, %v980
          %v983 = vmul.f32 %v967, %v981
          %v984 = vld [vmem:[%s7] sm:$0x1]
          %v986 = vlaneseq
          %v987 = vshrl.u32 %v986, 7
          %v988 = vsub.s32 0, %v987
          %v989 = vrot.slane %v984, %v988
          %v991 = vmul.f32 %v982, %v989
          %v992 = vmul.f32 %v983, %v989
          %v993 = vld [vmem:[%s8] sm:$0x1]
          %v995 = vlaneseq
          %v996 = vshrl.u32 %v995, 7
          %v997 = vsub.s32 0, %v996
          %v998 = vrot.slane %v993, %v997
          %v1000 = vadd.f32 %v991, %v998
          %v1001 = vadd.f32 %v992, %v998
          %1002 = vst.msk [vmem:[#allocation3] sm:$0xff] %vm508, %v1000
          %1003 = vst.msk [vmem:[#allocation3 + $0x8] sm:$0xff] %vm508, %v1001
        $region64: #{tpu_custom_call.1} parent=55 // pred_fallthru
          _
        // Predicated region
        $region65: #{tpu_custom_call.1} parent=55 // pred_check
          %p1004 = pneg %p275
        $region66: #{tpu_custom_call.1} parent=55 // pred_check_branch
          %1006 = sbr.rel (%p1004) target = $region68
        $region67: #{tpu_custom_call.1} parent=55 // pred_region
          %s1007 = smul.u32 2, %s25
          %s1009 = ssub.s32 256, 256
          %1010 = vsyncadd [#allocation4], %s1009
          %s1011 = smul.addr %s1007, 128
          %s1012 = scalar_lea.hbm %s9, %s1011
          %s1013 = sshll.u32 [#allocation3], 4
          %s1014 = int_to_ptr.vmem [resolvable:$true] %s1013
          %1019 = dma.vmem_to_hbm [thread:$0]  %s1014, 256, %s1012, [#allocation4], 128, 128, 8
        $region68: #{tpu_custom_call.1} parent=55 // pred_fallthru
          _
        // Predicated region
        $region69: #{tpu_custom_call.1} parent=55 // pred_check
          %p1020 = pneg %p275
        $region70: #{tpu_custom_call.1} parent=55 // pred_check_branch
          %1022 = sbr.rel (%p1020) target = $region72
        $region71: #{tpu_custom_call.1} parent=55 // pred_region
          %1023 = dma.done [#allocation4], 256
        $region72: #{tpu_custom_call.1} parent=55 // pred_fallthru
          _
      $region56: #{tpu_custom_call.1} parent=5 // pred_fallthru
        _
      %p1024 = scmp.le.s32.totalorder 2, %s16
      // Predicated region
      $region73: #{tpu_custom_call.1} parent=5 // pred_check
        %p1025 = pneg %p1024
      $region74: #{tpu_custom_call.1} parent=5 // pred_check_branch
        %1027 = sbr.rel (%p1025) target = $region76
      $region75: #{tpu_custom_call.1} parent=5 // pred_region
        %s1028 = ssub.s32 %s16, 2
      $region76: #{tpu_custom_call.1} parent=5 // pred_fallthru
        _
    $region6: #{tpu_custom_call.1} parent=1 // loop_footer
      %s20 = sadd.s32 1, %s16
    $region7: #{tpu_custom_call.1} parent=1 // loop_footer_branch
      %15 = sbr.rel target = $region3
    $region8: #{tpu_custom_call.1} parent=1 // loop_exit
      _
    %1029 = vsyncpa [#allocation4], 1
    %s1030 = scalar_lea.sflag [#allocation4], 1
    %1031 = vsyncpa %s1030, 1

</llo_original>
